<compile_context>
chip_gen: v6e
topology: v6e:2x2x1
jax: 0.10.0
libtpu: 0.0.40
codegen_flags: <defaults>
</compile_context>

<pallas_src>
import functools

import jax
import jax.numpy as jnp
from jax.experimental import pallas as pl
from jax.experimental.pallas import tpu as pltpu

_LOSS_LANES = 128  # lane-padded per-sample loss output (avoids width-1 masked stores)


def _vmem_budget_bytes():
    # Generation-aware scoped-VMEM budget: ~3/4 of capacity, capped at 100 MiB.
    try:
        cap = pltpu.get_tpu_info().vmem_capacity_bytes
    except Exception:
        cap = 64 * 1024 * 1024  # conservative fallback (v7x-sized)
    return int(min(cap * 3 // 4, 100 * 1024 * 1024))


_VMEM_BUDGET = _vmem_budget_bytes()
_BIG_VMEM = _VMEM_BUDGET >= 64 * 1024 * 1024          # v5e / v6e (128 MiB parts)
_ROW_TILE_PREF = 256 if _BIG_VMEM else 128            # bigger row tiles on big-VMEM parts


def _round_up(v, m):
    return ((v + m - 1) // m) * m


def _pick_row_tile(n, pref=128):
    """Largest row tile (multiple of 8) that divides n and leaves >=2 grid blocks."""
    for t in (pref, 128, 64, 32, 16, 8):
        if t <= n and n % t == 0 and n // t >= 2:
            return t
    return n


# ----------------------------------------------------------------------------
# Tiled linear (+ bias, optional fused ReLU) — bf16 MXU operands, f32 accumulation
# ----------------------------------------------------------------------------
def _linear_kernel(relu, x_ref, w_ref, b_ref, o_ref, acc_ref):
    @pl.when(pl.program_id(2) == 0)
    def _():
        acc_ref[...] = jnp.zeros_like(acc_ref)

    acc_ref[...] += jax.lax.dot_general(
        x_ref[...], w_ref[...], (((1,), (0,)), ((), ())),
        preferred_element_type=jnp.float32)

    @pl.when(pl.program_id(2) == pl.num_programs(2) - 1)
    def _():
        y = acc_ref[...] + b_ref[...]
        if relu:
            y = jnp.maximum(y, 0.0)
        o_ref[...] = y.astype(o_ref.dtype)


def linear_pallas(x, w, b, *, relu=False, out_dtype=jnp.float32,
                  tm_max=None, tn_max=256, tk_max=512):
    M, K = x.shape
    _, N = w.shape
    if tm_max is None:
        tm_max = 256 if _BIG_VMEM else 128
    tm = min(tm_max, _round_up(M, 16))     # multiple of 16 (bf16 sublane packing)
    tn = min(tn_max, _round_up(N, 128))
    tk = min(tk_max, _round_up(K, 128))
    M_pad, N_pad, K_pad = _round_up(M, tm), _round_up(N, tn), _round_up(K, tk)

    # v7x has 2 TensorCores: try to expose >=2 parallel grid blocks on small shapes.
    if (M_pad // tm) * (N_pad // tn) == 1:
        if N_pad >= 256:
            tn = 128
        elif M_pad >= 32 and (M_pad // 2) % 16 == 0:
            tm = M_pad // 2

    # pad directly in bf16 (no f32 pad + cast pass); zero padding keeps the math exact.
    x_p = jnp.pad(x.astype(jnp.bfloat16), ((0, M_pad - M), (0, K_pad - K)))
    w_p = jnp.pad(w.astype(jnp.bfloat16), ((0, K_pad - K), (0, N_pad - N)))
    b_p = jnp.pad(b.reshape(1, -1).astype(jnp.float32), ((0, 0), (0, N_pad - N)))

    out = pl.pallas_call(
        functools.partial(_linear_kernel, relu),
        out_shape=jax.ShapeDtypeStruct((M_pad, N_pad), out_dtype),
        grid=(M_pad // tm, N_pad // tn, K_pad // tk),
        in_specs=[pl.BlockSpec((tm, tk), lambda i, j, k: (i, k)),
                  pl.BlockSpec((tk, tn), lambda i, j, k: (k, j)),
                  pl.BlockSpec((1, tn), lambda i, j, k: (0, j))],
        out_specs=pl.BlockSpec((tm, tn), lambda i, j, k: (i, j)),
        scratch_shapes=[pltpu.VMEM((tm, tn), jnp.float32)],
        compiler_params=pltpu.CompilerParams(
            dimension_semantics=("parallel", "parallel", "arbitrary"),
            vmem_limit_bytes=_VMEM_BUDGET),
    )(x_p, w_p, b_p)
    return out[:M, :N]


# ----------------------------------------------------------------------------
# Row-parallel L2 normalize (F.normalize(dim=1), eps=1e-12) via rsqrt (EUP slot)
# ----------------------------------------------------------------------------
def _l2norm_kernel(z_ref, o_ref):
    z = z_ref[...]
    s = jnp.sum(z * z, axis=1, keepdims=True)
    o_ref[...] = z * jax.lax.rsqrt(jnp.maximum(s, 1e-24))


def l2norm_pallas(z):
    n, c = z.shape
    tr = _pick_row_tile(n, _ROW_TILE_PREF)
    return pl.pallas_call(
        _l2norm_kernel,
        out_shape=jax.ShapeDtypeStruct((n, c), jnp.float32),
        grid=(n // tr,),
        in_specs=[pl.BlockSpec((tr, c), lambda i: (i, 0))],
        out_specs=pl.BlockSpec((tr, c), lambda i: (i, 0)),
        compiler_params=pltpu.CompilerParams(
            dimension_semantics=("parallel",),
            vmem_limit_bytes=_VMEM_BUDGET),
    )(z)


# ----------------------------------------------------------------------------
# NT-Xent: one [tr,C]x[C,2B] MXU pass per row block + fused per-row cross entropy
# Keys are passed pre-transposed (C, 2B) so the MXU sees a standard contraction.
# ----------------------------------------------------------------------------
def _make_ntxent_kernel(two_b, temperature, tr):
    inv_t = 1.0 / float(temperature)
    b = two_b // 2

    def kernel(zq_ref, zkT_ref, sim_ref, loss_ref):
        i = pl.program_id(0)
        sim = jax.lax.dot_general(
            zq_ref[...], zkT_ref[...], (((1,), (0,)), ((), ())),
            preferred_element_type=jnp.float32) * inv_t
        sim_ref[...] = sim                                   # one full-block store

        # masks from (tr,1) vs (1,2B) iota compares (no materialized (tr,2B) int32 iotas)
        row = jax.lax.broadcasted_iota(jnp.int32, (tr, 1), 0) + i * tr     # (tr, 1)
        col = jax.lax.broadcasted_iota(jnp.int32, (1, two_b), 1)           # (1, 2B)
        diag = row == col                                                   # (tr, 2B)
        pos_col = jnp.where(row < b, row + b, row - b)                      # (tr, 1)

        # one max/exp/sum pass over the full row with the self-similarity masked out
        masked = jnp.where(diag, jnp.float32(-1e30), sim)
        mx = jnp.max(masked, axis=1, keepdims=True)
        se = jnp.sum(jnp.exp(masked - mx), axis=1, keepdims=True)
        lse = jnp.log(se) + mx
        correct = jnp.sum(jnp.where(col == pos_col, sim, 0.0), axis=1, keepdims=True)
        # lane-padded per-sample loss (avoids width-1 masked stores)
        loss_ref[...] = jnp.broadcast_to(lse - correct, (tr, _LOSS_LANES))

    return kernel


def ntxent_pallas(z, temperature):
    """z = [z_0; z_1] stacked (2B, C). Returns (sim=(2B,2B)/T, per-sample CE loss (2B,))."""
    two_b, c = z.shape
    c_pad = _round_up(c, 128)
    z_p = jnp.pad(z.astype(jnp.float32), ((0, 0), (0, c_pad - c)))
    zn = l2norm_pallas(z_p)
    zn_t = zn.T                                   # one-time HBM transpose of the key set
    tr = _pick_row_tile(two_b, _ROW_TILE_PREF)
    sim, loss = pl.pallas_call(
        _make_ntxent_kernel(two_b, temperature, tr),
        out_shape=(jax.ShapeDtypeStruct((two_b, two_b), jnp.float32),
                   jax.ShapeDtypeStruct((two_b, _LOSS_LANES), jnp.float32)),
        grid=(two_b // tr,),
        in_specs=[pl.BlockSpec((tr, c_pad), lambda i: (i, 0)),       # query row block
                  pl.BlockSpec((c_pad, two_b), lambda i: (0, 0))],   # resident key set (C, 2B)
        out_specs=(pl.BlockSpec((tr, two_b), lambda i: (i, 0)),
                   pl.BlockSpec((tr, _LOSS_LANES), lambda i: (i, 0))),
        compiler_params=pltpu.CompilerParams(
            dimension_semantics=("parallel",),
            vmem_limit_bytes=_VMEM_BUDGET),
    )(zn, zn_t)
    # sim layout: [[z0z0, z0z1], [z1z0, z1z1]] / temperature
    return sim, loss[:, 0]


# ----------------------------------------------------------------------------
# Pairwise Euclidean distance matrix (row-block grid, pre-transposed keys,
# hoisted ||x_j||^2 passed in as a (1, N) input)
# ----------------------------------------------------------------------------
def _cdist_kernel(xq_ref, xkT_ref, sqk_ref, o_ref):
    xq = xq_ref[...]                                                  # (tr, C)
    sq_q = jnp.sum(xq * xq, axis=1, keepdims=True)                    # (tr, 1)
    g = jax.lax.dot_general(xq, xkT_ref[...], (((1,), (0,)), ((), ())),
                            preferred_element_type=jnp.float32)       # (tr, N)
    d2 = sq_q + sqk_ref[...] - 2.0 * g
    o_ref[...] = jnp.sqrt(jnp.maximum(d2, 0.0))


def cdist_pallas(x):
    n, c = x.shape
    c_pad = _round_up(c, 128)
    x_p = jnp.pad(x.astype(jnp.float32), ((0, 0), (0, c_pad - c)))
    x_t = x_p.T                                     # one-time HBM transpose (C_pad, N)
    sq_k = jnp.sum(x_p * x_p, axis=1)[None, :]      # hoisted ||x_j||^2, (1, N)
    tr = _pick_row_tile(n, _ROW_TILE_PREF)
    return pl.pallas_call(
        _cdist_kernel,
        out_shape=jax.ShapeDtypeStruct((n, n), jnp.float32),
        grid=(n // tr,),
        in_specs=[pl.BlockSpec((tr, c_pad), lambda i: (i, 0)),
                  pl.BlockSpec((c_pad, n), lambda i: (0, 0)),
                  pl.BlockSpec((1, n), lambda i: (0, 0))],
        out_specs=pl.BlockSpec((tr, n), lambda i: (i, 0)),
        compiler_params=pltpu.CompilerParams(
            dimension_semantics=("parallel",),
            vmem_limit_bytes=_VMEM_BUDGET),
    )(x_p, x_t, sq_k)


# ----------------------------------------------------------------------------
# LID estimators. Only the min(513, N) nearest neighbors are needed, so the full
# row sort is replaced by lax.top_k of negated distances.
# TODO(synk): row-wise partial selection has no clean Pallas TPU equivalent; lax.top_k used.
# ----------------------------------------------------------------------------
def nearest_distances(dist, k_max=512):
    n_ref = dist.shape[1]
    kk = min(k_max + 1, n_ref)
    neg_top, _ = jax.lax.top_k(-dist, kk)
    return -neg_top, n_ref              # ascending nearest-kk distances per row


def lid_mom_est_from_sorted(a_sorted, k, n_ref):
    k = min(k, n_ref - 2)
    m = jnp.mean(a_sorted[:, 1:k], axis=1)
    return m / (a_sorted[:, k] - m)


def lid_mle_from_sorted(a_sorted, k, n_ref):
    k = min(k, n_ref - 2)
    ratio = a_sorted[:, 1:k + 1] / a_sorted[:, k:k + 1]
    return -k / jnp.sum(jnp.log(ratio + 1e-12), axis=1)


def _remove_diag(m):
    # m: (B, B) -> (B, B-1), identical to m[~eye].view(B, B-1)
    n = m.shape[0]
    return m.reshape(-1)[:-1].reshape(n - 1, n + 1)[:, 1:].reshape(n, n - 1)


# ----------------------------------------------------------------------------
# Synthetic model (f, z, cls): one batched encoder pass; z-projection and cls-head
# fused into a single lane-padded matmul from f.
# ----------------------------------------------------------------------------
def model_forward(params, x):
    n = x.shape[0]
    x_flat = x.reshape(n, -1)
    f = linear_pallas(x_flat, params["w_f"], params["b_f"], relu=True)
    w_zc = jnp.concatenate([params["w_z"], params["w_c"]], axis=1)
    b_zc = jnp.concatenate([params["b_z"], params["b_c"]], axis=1)
    zc = linear_pallas(f, w_zc, b_zc)            # one MXU pass from f
    proj = params["w_z"].shape[1]
    ncls = params["w_c"].shape[1]
    return f, zc[:, :proj], zc[:, proj:proj + ncls]


# ----------------------------------------------------------------------------
# NTXentLIDReg forward (temperature=0.5, reg_type='l1', lid_type='f', alpha=1.0,
#                       k=20, est_type='mom', warmup_epochs=0, epoch=0, single device)
# ----------------------------------------------------------------------------
def ntxent_lid_reg_forward(params, x0, x1, online_labels,
                           temperature=0.5, alpha=1.0, k=20):
    batch = x0.shape[0]
    # ONE batched encoder pass over both views: rows are ordered [view0; view1].
    x = jnp.concatenate([x0, x1], axis=0)
    f, z, cls = model_forward(params, x)

    # ---- online classification head (small, plain JAX glue) ----
    labels2 = jnp.concatenate([online_labels, online_labels], axis=0)
    logp = jax.nn.log_softmax(cls, axis=1)
    online_prob_loss = -jnp.mean(jnp.take_along_axis(logp, labels2[:, None], axis=1))
    online_acc = jnp.mean((jnp.argmax(cls, axis=1) == labels2).astype(jnp.float32)) * 100.0
    # TODO(synk): `online_prob_loss.backward()` is a training side effect; forward only here.

    # ---- NT-Xent similarity loss (Pallas: fused z@z.T + per-row CE) ----
    sim, loss = ntxent_pallas(z, temperature)
    l00 = sim[:batch, :batch]
    l01 = sim[:batch, batch:]
    l10 = sim[batch:, :batch]
    l11 = sim[batch:, batch:]
    logits = jnp.concatenate(
        [jnp.concatenate([l01, _remove_diag(l00)], axis=1),
         jnp.concatenate([l10, _remove_diag(l11)], axis=1)], axis=0)    # (2B, 2B-1)
    labels = jnp.tile(jnp.arange(batch, dtype=jnp.int32), 2)

    # ---- LID regularization (lid_type='f', est_type='mom', reg_type='l1') ----
    dist = cdist_pallas(f)                      # Pallas pairwise distances on f = [f_i; f_j]
    dist_near, n_ref = nearest_distances(dist, k_max=512)
    lids = lid_mom_est_from_sorted(dist_near, k, n_ref)
    lid_reg = -jnp.abs(jnp.log(lids))           # reg_type == 'l1'
    total_loss = jnp.mean(loss + alpha * lid_reg)

    # ---- track_lid (MLE estimator, k=32 and k=512) — same feature/distance matrix ----
    lids_k32 = lid_mle_from_sorted(dist_near, 32, n_ref)
    lids_k512 = lid_mle_from_sorted(dist_near, 512, n_ref)

    return {
        "loss": total_loss,
        "logits": logits,
        "labels": labels,
        "lids32": lids_k32,
        "lids512": lids_k512,
        "reg_loss": jnp.mean(lid_reg),
        "main_loss": jnp.mean(loss),
        "online_acc": online_acc,
        "online_prob_loss": online_prob_loss,
    }


# ----------------------------------------------------------------------------
if __name__ == "__main__":
    key = jax.random.PRNGKey(0)
    B, C, H, W = 8, 4, 16, 16
    FEAT, PROJ, NCLS = 64, 32, 10

    k0, k1, kw1, kw2, kw3, kl = jax.random.split(key, 6)
    x0 = jax.random.normal(k0, (B, C, H, W), jnp.float32)
    x1 = jax.random.normal(k1, (B, C, H, W), jnp.float32)
    online_labels = jax.random.randint(kl, (B,), 0, NCLS, dtype=jnp.int32)

    params = {
        "w_f": 0.02 * jax.random.normal(kw1, (C * H * W, FEAT), jnp.float32),
        "b_f": jnp.zeros((1, FEAT), jnp.float32),
        "w_z": 0.02 * jax.random.normal(kw2, (FEAT, PROJ), jnp.float32),
        "b_z": jnp.zeros((1, PROJ), jnp.float32),
        "w_c": 0.02 * jax.random.normal(kw3, (FEAT, NCLS), jnp.float32),
        "b_c": jnp.zeros((1, NCLS), jnp.float32),
    }

    results = ntxent_lid_reg_forward(params, x0, x1, online_labels,
                                     temperature=0.5, alpha=1.0, k=20)
    results = jax.block_until_ready(results)

    assert results["logits"].shape == (2 * B, 2 * B - 1)
    assert results["labels"].shape == (2 * B,)
    assert results["lids32"].shape == (2 * B,)
    assert bool(jnp.isfinite(results["loss"]))
    print("KERNEL_OK")
</pallas_src>

<mosaic_0001>
module attributes {stable_mosaic.version = 11 : i64} {
  func.func @_linear_kernel(%arg0: i32, %arg1: i32, %arg2: i32, %arg3: memref<16x512xbf16, #tpu.memory_space<vmem>>, %arg4: memref<512x128xbf16, #tpu.memory_space<vmem>>, %arg5: memref<1x128xf32, #tpu.memory_space<vmem>>, %arg6: memref<16x128xf32, #tpu.memory_space<vmem>>, %arg7: memref<16x128xf32, #tpu.memory_space<vmem>>) attributes {dimension_semantics = [#tpu.dimension_semantics<parallel>, #tpu.dimension_semantics<parallel>, #tpu.dimension_semantics<arbitrary>], iteration_bounds = array<i64: 1, 1, 2>, scalar_prefetch = 0 : i64, scratch_operands = 1 : i64, tpu.core_type = #tpu.core_type<tc>, window_params = [{transform_indices = @transform_0, window_bounds = array<i64: 16, 512>}, {transform_indices = @transform_1, window_bounds = array<i64: 512, 128>}, {transform_indices = @transform_2, window_bounds = array<i64: 1, 128>}, {transform_indices = @transform_3, window_bounds = array<i64: 16, 128>}]} {
    %c0_i32 = arith.constant 0 : i32
    %0 = arith.cmpi eq, %arg2, %c0_i32 : i32
    %1 = arith.extui %0 : i1 to i32
    %c0_i32_0 = arith.constant 0 : i32
    %2 = arith.cmpi ne, %1, %c0_i32_0 : i32
    scf.if %2 {
      %cst_9 = arith.constant 0.000000e+00 : f32
      %12 = vector.broadcast %cst_9 : f32 to vector<16x128xf32>
      %c0_10 = arith.constant 0 : index
      %c0_11 = arith.constant 0 : index
      %13 = vector.load %arg7[%c0_10, %c0_11] : memref<16x128xf32, #tpu.memory_space<vmem>>, vector<16x128xf32>
      tpu.vector_store %arg7[%c0_10, %c0_11], %12 {strides = array<i32>} : memref<16x128xf32, #tpu.memory_space<vmem>>, vector<16x128xf32>,
    } else {
    }
    %c0 = arith.constant 0 : index
    %c0_1 = arith.constant 0 : index
    %3 = vector.load %arg7[%c0, %c0_1] : memref<16x128xf32, #tpu.memory_space<vmem>>, vector<16x128xf32>
    %c0_2 = arith.constant 0 : index
    %c0_3 = arith.constant 0 : index
    %4 = vector.load %arg3[%c0_2, %c0_3] : memref<16x512xbf16, #tpu.memory_space<vmem>>, vector<16x512xbf16>
    %c0_4 = arith.constant 0 : index
    %c0_5 = arith.constant 0 : index
    %5 = vector.load %arg4[%c0_4, %c0_5] : memref<512x128xbf16, #tpu.memory_space<vmem>>, vector<512x128xbf16>
    %cst = arith.constant dense<0.000000e+00> : vector<16x128xf32>
    %6 = tpu.matmul %4, %5, %cst {dimension_numbers = #tpu.dot_dimension_numbers<[1], [0], [0], [1], [0, 0, 1, 1], [], []>} : vector<16x512xbf16>, vector<512x128xbf16>, vector<16x128xf32> -> vector<16x128xf32>
    %7 = arith.addf %3, %6 : vector<16x128xf32>
    %c0_6 = arith.constant 0 : index
    %c0_7 = arith.constant 0 : index
    %8 = vector.load %arg7[%c0_6, %c0_7] : memref<16x128xf32, #tpu.memory_space<vmem>>, vector<16x128xf32>
    tpu.vector_store %arg7[%c0_6, %c0_7], %7 {strides = array<i32>} : memref<16x128xf32, #tpu.memory_space<vmem>>, vector<16x128xf32>,
    %c1_i32 = arith.constant 1 : i32
    %9 = arith.cmpi eq, %arg2, %c1_i32 : i32
    %10 = arith.extui %9 : i1 to i32
    %c0_i32_8 = arith.constant 0 : i32
    %11 = arith.cmpi ne, %10, %c0_i32_8 : i32
    scf.if %11 {
      %c0_9 = arith.constant 0 : index
      %c0_10 = arith.constant 0 : index
      %12 = vector.load %arg7[%c0_9, %c0_10] : memref<16x128xf32, #tpu.memory_space<vmem>>, vector<16x128xf32>
      %c0_11 = arith.constant 0 : index
      %c0_12 = arith.constant 0 : index
      %13 = vector.load %arg5[%c0_11, %c0_12] : memref<1x128xf32, #tpu.memory_space<vmem>>, vector<1x128xf32>
      %14 = vector.broadcast %13 : vector<1x128xf32> to vector<16x128xf32>
      %15 = arith.addf %12, %14 : vector<16x128xf32>
      %cst_13 = arith.constant 0.000000e+00 : f32
      %16 = vector.broadcast %cst_13 : f32 to vector<16x128xf32>
      %17 = arith.maximumf %15, %16 : vector<16x128xf32>
      %c0_14 = arith.constant 0 : index
      %c0_15 = arith.constant 0 : index
      %18 = vector.load %arg6[%c0_14, %c0_15] : memref<16x128xf32, #tpu.memory_space<vmem>>, vector<16x128xf32>
      tpu.vector_store %arg6[%c0_14, %c0_15], %17 {strides = array<i32>} : memref<16x128xf32, #tpu.memory_space<vmem>>, vector<16x128xf32>,
    } else {
    }
    return
  }
  func.func @transform_0(%arg0: i32, %arg1: i32, %arg2: i32) -> (i32, i32) {
    %c0_i32 = arith.constant 0 : i32
    return %arg0, %arg2 : i32, i32
  }
  func.func @transform_1(%arg0: i32, %arg1: i32, %arg2: i32) -> (i32, i32) {
    %c0_i32 = arith.constant 0 : i32
    return %arg2, %arg1 : i32, i32
  }
  func.func @transform_2(%arg0: i32, %arg1: i32, %arg2: i32) -> (i32, i32) {
    %c0_i32 = arith.constant 0 : i32
    %c0_i32_0 = arith.constant 0 : i32
    return %c0_i32, %arg1 : i32, i32
  }
  func.func @transform_3(%arg0: i32, %arg1: i32, %arg2: i32) -> (i32, i32) {
    %c0_i32 = arith.constant 0 : i32
    return %arg0, %arg1 : i32, i32
  }
}

</mosaic_0001>

<llo_original>
// kernel: tpu_custom_call.1
$region0: #{tpu_custom_call.1}
  #allocation0 [shape = 'u32[]', space=smem, size = 0x4, offset = 0x4, fixed_abs, tag = 'smem constant byte address 0x4 - core index']
  #allocation1 [shape = 'u32[144,128]{1,0:T(1,128)}', space=vmem, size = 0x12000, scoped, tag = 'internal scratch']
  #allocation2 [shape = 'f32[16,128]{1,0:T(8,128)}', space=vmem, size = 0x2000, scoped, tag = 'scratch operand']
  %s0 = inlined_call_operand.hbm [shape: bf16[16,1024], index: 0, kind: input, shape index: {}]
  %s1 = inlined_call_operand.hbm [shape: bf16[1024,128], index: 1, kind: input, shape index: {}]
  %s2 = inlined_call_operand.vmem [shape: f32[1,128], index: 2, kind: input, shape index: {}]
  %s3 = inlined_call_operand.hbm [shape: f32[16,128], index: 3, kind: output, shape index: {}]
  %s4 = sld [smem:[#allocation0]]
  $region61: #{tpu_custom_call.1} parent=0
    _
  %s6 = ssub.s32 1, %s4
  %s7 = scalar_select 0, %s6, %s4
  $region1: #{tpu_custom_call.1} parent=0
    #allocation3 [shape = 'u8[32768]{0}', space=vmem, size = 0x8000, scoped, tag = 'input window, operand 0']
    #allocation4 [shape = 's32[2]{0}', space=sflag, size = 0x8, scoped, tag = 'scoped memory for tpu_custom_call.1']
    #allocation5 [shape = 's32[2]{0}', space=sflag, size = 0x8, scoped, tag = 'scoped memory for tpu_custom_call.1']
    #allocation6 [shape = 'u8[262144]{0}', space=vmem, size = 0x40000, scoped, tag = 'input window, operand 1']
    #allocation7 [shape = 's32[2]{0}', space=sflag, size = 0x8, scoped, tag = 'scoped memory for tpu_custom_call.1']
    #allocation8 [shape = 'u8[8192]{0}', space=vmem, size = 0x2000, scoped, tag = 'output window, operand 0, single buffered']
    %8 = vsyncpa [#allocation4], 0
    %s9 = scalar_lea.sflag [#allocation4], 1
    %10 = vsyncpa %s9, 0
    %11 = vsyncpa [#allocation7], 0
    %s12 = scalar_lea.sflag [#allocation7], 1
    %13 = vsyncpa %s12, 0
    %14 = vsyncpa [#allocation5], 0
    loop: start=0, step=1, limit=4
    $region2: #{tpu_custom_call.1} parent=1 // loop_pre_header
      _
    $region3: #{tpu_custom_call.1} parent=1 // loop_header
      %s16 = sphi 0, %s20
      %p17 = scmp.ge.s32.totalorder %s16, 4
      %s23 = sphi 0, %s42
      %s24 = sphi 0, %s38
      %s25 = sphi 0, %s34
      %s26 = sphi 0, %s23
      %s27 = sphi 0, %s24
      %s28 = sphi 0, %s25
      %s29 = sphi 0, %s26
      %s30 = sphi 0, %s27
      %s31 = sphi 0, %s28
      %s47 = sphi 0, %s49
      %s50 = sphi 0, %s47
      %s51 = sphi 0, %s50
      %s67 = sphi 0, %s51
      %s75 = sphi 0, %s77
      %s78 = sphi 0, %s75
      %s79 = sphi 0, %s78
      %s95 = sphi 0, %s79
      %s101 = sphi 0, %s103
      %s104 = sphi 0, %s101
      %s105 = sphi 0, %s104
      %s121 = sphi 0, %s105
      %s129 = sphi 0, %s131
      %s132 = sphi 0, %s129
      %s133 = sphi 0, %s132
      %s149 = sphi 0, %s133
    $region4: #{tpu_custom_call.1} parent=1 // loop_header_branch
      %19 = sbr.rel (%p17) target = $region8
    $region5: #{tpu_custom_call.1} parent=1 // loop_body
      %s21 = ssub.s32 %s16, 1
      %s22 = ssub.s32 %s16, 2
      %s32 = sadd.s32 1, %s25
      %p33 = scmp.ge.s32.totalorder %s32, 2
      %s34 = scalar_select %p33, 0, %s32
      %s35 = sadd.s32 1, %s24
      %s36 = scalar_select %p33, %s35, %s24
      %p37 = scmp.ge.s32.totalorder %s36, 1
      %s38 = scalar_select %p37, 0, %s36
      %s39 = sadd.s32 1, %s23
      %s40 = scalar_select %p37, %s39, %s23
      %p41 = scmp.ge.s32.totalorder %s40, 1
      %s42 = scalar_select %p41, 0, %s40
      %s43 = ssub.s32 %s23, %s42
      %s44 = ssub.s32 %s25, %s34
      %s45 = sor.u32 %s43, %s44
      %p46 = scmp.eq.s32.totalorder %s45, 0
      %s48 = sadd.s32 %s47, 1
      %s49 = scalar_select %p46, %s47, %s48
      %p52 = pneg %p46
      %p53 = scmp.eq.s32.totalorder %s16, 1
      %p54 = por %p52, %p53
      %p55 = scmp.ne.s32.totalorder %s47, %s50
      %p56 = scmp.eq.s32.totalorder %s16, 0
      %p57 = por %p55, %p56
      %p58 = scmp.ne.s32.totalorder %s47, %s50
      %p59 = scmp.eq.s32.totalorder %s21, 1
      %p60 = por %p58, %p59
      %p61 = scmp.ne.s32.totalorder %s50, %s51
      %p62 = scmp.eq.s32.totalorder %s21, 0
      %p63 = por %p61, %p62
      %p64 = scmp.ne.s32.totalorder %s50, %s51
      %p65 = scmp.eq.s32.totalorder %s22, 1
      %p66 = por %p64, %p65
      %p68 = scmp.ne.s32.totalorder %s51, %s67
      %p69 = scmp.eq.s32.totalorder %s22, 0
      %p70 = por %p68, %p69
      %s71 = ssub.s32 %s25, %s34
      %s72 = ssub.s32 %s24, %s38
      %s73 = sor.u32 %s71, %s72
      %p74 = scmp.eq.s32.totalorder %s73, 0
      %s76 = sadd.s32 %s75, 1
      %s77 = scalar_select %p74, %s75, %s76
      %p80 = pneg %p74
      %p81 = scmp.eq.s32.totalorder %s16, 1
      %p82 = por %p80, %p81
      %p83 = scmp.ne.s32.totalorder %s75, %s78
      %p84 = scmp.eq.s32.totalorder %s16, 0
      %p85 = por %p83, %p84
      %p86 = scmp.ne.s32.totalorder %s75, %s78
      %p87 = scmp.eq.s32.totalorder %s21, 1
      %p88 = por %p86, %p87
      %p89 = scmp.ne.s32.totalorder %s78, %s79
      %p90 = scmp.eq.s32.totalorder %s21, 0
      %p91 = por %p89, %p90
      %p92 = scmp.ne.s32.totalorder %s78, %s79
      %p93 = scmp.eq.s32.totalorder %s22, 1
      %p94 = por %p92, %p93
      %p96 = scmp.ne.s32.totalorder %s79, %s95
      %p97 = scmp.eq.s32.totalorder %s22, 0
      %p98 = por %p96, %p97
      %s99 = ssub.s32 %s24, %s38
      %p100 = scmp.eq.s32.totalorder %s99, 0
      %s102 = sadd.s32 %s101, 1
      %s103 = scalar_select %p100, %s101, %s102
      %p106 = pneg %p100
      %p107 = scmp.eq.s32.totalorder %s16, 1
      %p108 = por %p106, %p107
      %p109 = scmp.ne.s32.totalorder %s101, %s104
      %p110 = scmp.eq.s32.totalorder %s16, 0
      %p111 = por %p109, %p110
      %p112 = scmp.ne.s32.totalorder %s101, %s104
      %p113 = scmp.eq.s32.totalorder %s21, 1
      %p114 = por %p112, %p113
      %p115 = scmp.ne.s32.totalorder %s104, %s105
      %p116 = scmp.eq.s32.totalorder %s21, 0
      %p117 = por %p115, %p116
      %p118 = scmp.ne.s32.totalorder %s104, %s105
      %p119 = scmp.eq.s32.totalorder %s22, 1
      %p120 = por %p118, %p119
      %p122 = scmp.ne.s32.totalorder %s105, %s121
      %p123 = scmp.eq.s32.totalorder %s22, 0
      %p124 = por %p122, %p123
      %s125 = ssub.s32 %s23, %s42
      %s126 = ssub.s32 %s24, %s38
      %s127 = sor.u32 %s125, %s126
      %p128 = scmp.eq.s32.totalorder %s127, 0
      %s130 = sadd.s32 %s129, 1
      %s131 = scalar_select %p128, %s129, %s130
      %p134 = pneg %p128
      %p135 = scmp.eq.s32.totalorder %s16, 1
      %p136 = por %p134, %p135
      %p137 = scmp.ne.s32.totalorder %s129, %s132
      %p138 = scmp.eq.s32.totalorder %s16, 0
      %p139 = por %p137, %p138
      %p140 = scmp.ne.s32.totalorder %s129, %s132
      %p141 = scmp.eq.s32.totalorder %s21, 1
      %p142 = por %p140, %p141
      %p143 = scmp.ne.s32.totalorder %s132, %s133
      %p144 = scmp.eq.s32.totalorder %s21, 0
      %p145 = por %p143, %p144
      %p146 = scmp.ne.s32.totalorder %s132, %s133
      %p147 = scmp.eq.s32.totalorder %s22, 1
      %p148 = por %p146, %p147
      %p150 = scmp.ne.s32.totalorder %s133, %s149
      %p151 = scmp.eq.s32.totalorder %s22, 0
      %p152 = por %p150, %p151
      %p153 = scmp.le.s32.totalorder 1, %s16
      %p154 = scmp.lt.s32.totalorder %s16, 3
      %p155 = pnand %p153, %p154
      %p156 = pneg %p155
      // Predicated region
      $region9: #{tpu_custom_call.1} parent=5 // pred_check
        _
      $region10: #{tpu_custom_call.1} parent=5 // pred_check_branch
        %158 = sbr.rel (%p155) target = $region12
      $region11: #{tpu_custom_call.1} parent=5 // pred_region
        %s159 = ssub.s32 %s16, 1
        // Predicated region
        $region13: #{tpu_custom_call.1} parent=11 // pred_check
          %p160 = pneg %p117
        $region14: #{tpu_custom_call.1} parent=11 // pred_check_branch
          %162 = sbr.rel (%p160) target = $region16
        $region15: #{tpu_custom_call.1} parent=11 // pred_region
          %p163 = scmp.lt.s32.totalorder %s27, 0
          %s164 = scalar_select %p163, %s27, 0
          %s165 = scalar_lea.vmem %s2, %s164
        $region16: #{tpu_custom_call.1} parent=11 // pred_fallthru
          _
      $region12: #{tpu_custom_call.1} parent=5 // pred_fallthru
        _
      %p166 = scmp.lt.s32.totalorder %s16, 2
      // Predicated region
      $region17: #{tpu_custom_call.1} parent=5 // pred_check
        %p167 = pneg %p166
      $region18: #{tpu_custom_call.1} parent=5 // pred_check_branch
        %169 = sbr.rel (%p167) target = $region20
      $region19: #{tpu_custom_call.1} parent=5 // pred_region
        // Predicated region
        $region21: #{tpu_custom_call.1} parent=19 // pred_check
          %p170 = pneg %p57
        $region22: #{tpu_custom_call.1} parent=19 // pred_check_branch
          %172 = sbr.rel (%p170) target = $region24
        $region23: #{tpu_custom_call.1} parent=19 // pred_region
          %s173 = sand.u32 %s47, 1
          %s174 = scalar_lea.sflag [#allocation4], %s173
          %s175 = sand.u32 %s47, 1
          %s176 = smul.addr %s175, 32
          %s177 = scalar_lea.vmem [#allocation3], %s176
          %s178 = smul.u32 2, %s23
          %s179 = smul.u32 4, %s25
          %s181 = ssub.s32 512, 512
          %182 = vsyncadd %s174, %s181
          %s183 = smul.addr %s178, 8
          %s184 = sadd.s32 %s179, %s183
          %s185 = smul.addr %s184, 64
          %s186 = scalar_lea.hbm %s0, %s185
          %s187 = sshll.u32 %s177, 4
          %s188 = int_to_ptr.vmem [resolvable:$true] %s187
          %193 = dma.hbm_to_vmem [thread:$0]  %s186, 512, %s188, %s174, 512, 256, 16
        $region24: #{tpu_custom_call.1} parent=19 // pred_fallthru
          _
        // Predicated region
        $region25: #{tpu_custom_call.1} parent=19 // pred_check
          %p194 = pneg %p85
        $region26: #{tpu_custom_call.1} parent=19 // pred_check_branch
          %196 = sbr.rel (%p194) target = $region28
        $region27: #{tpu_custom_call.1} parent=19 // pred_region
          %s197 = sand.u32 %s75, 1
          %s198 = scalar_lea.sflag [#allocation7], %s197
          %s199 = sand.u32 %s75, 1
          %s200 = smul.addr %s199, 256
          %s201 = scalar_lea.vmem [#allocation6], %s200
          %s202 = smul.u32 64, %s25
          %s204 = ssub.s32 4096, 4096
          %205 = vsyncadd %s198, %s204
          %s206 = sadd.s32 %s24, %s202
          %s207 = smul.addr %s206, 64
          %s208 = scalar_lea.hbm %s1, %s207
          %s209 = sshll.u32 %s201, 4
          %s210 = int_to_ptr.vmem [resolvable:$true] %s209
          %215 = dma.hbm_to_vmem [thread:$0]  %s208, 4096, %s210, %s198, 64, 64, 4
        $region28: #{tpu_custom_call.1} parent=19 // pred_fallthru
          _
      $region20: #{tpu_custom_call.1} parent=5 // pred_fallthru
        _
      %p216 = scmp.le.s32.totalorder 1, %s16
      %p217 = scmp.lt.s32.totalorder %s16, 3
      %p218 = pnand %p216, %p217
      %p219 = pneg %p218
      // Predicated region
      $region29: #{tpu_custom_call.1} parent=5 // pred_check
        _
      $region30: #{tpu_custom_call.1} parent=5 // pred_check_branch
        %221 = sbr.rel (%p218) target = $region32
      $region31: #{tpu_custom_call.1} parent=5 // pred_region
        %s222 = ssub.s32 %s16, 1
        %s223 = sand.u32 %s50, 1
        %s224 = scalar_lea.sflag [#allocation4], %s223
        %s225 = sand.u32 %s50, 1
        %s226 = smul.addr %s225, 32
        %s227 = scalar_lea.vmem [#allocation3], %s226
        // Predicated region
        $region33: #{tpu_custom_call.1} parent=31 // pred_check
          %p228 = pneg %p63
        $region34: #{tpu_custom_call.1} parent=31 // pred_check_branch
          %230 = sbr.rel (%p228) target = $region36
        $region35: #{tpu_custom_call.1} parent=31 // pred_region
          %231 = dma.done %s224, 512
        $region36: #{tpu_custom_call.1} parent=31 // pred_fallthru
          _
        %s232 = sand.u32 %s78, 1
        %s233 = scalar_lea.sflag [#allocation7], %s232
        %s234 = sand.u32 %s78, 1
        %s235 = smul.addr %s234, 256
        %s236 = scalar_lea.vmem [#allocation6], %s235
        // Predicated region
        $region37: #{tpu_custom_call.1} parent=31 // pred_check
          %p237 = pneg %p91
        $region38: #{tpu_custom_call.1} parent=31 // pred_check_branch
          %239 = sbr.rel (%p237) target = $region40
        $region39: #{tpu_custom_call.1} parent=31 // pred_region
          %240 = dma.done %s233, 4096
        $region40: #{tpu_custom_call.1} parent=31 // pred_fallthru
          _
        %s241 = sand.u32 %s50, 1
        %s242 = scalar_lea.sflag [#allocation4], %s241
        %s243 = sand.u32 %s50, 1
        %s244 = smul.addr %s243, 32
        %s245 = scalar_lea.vmem [#allocation3], %s244
        %p246 = pneg %p63
        %p247 = pneg %p60
        %s248 = sand.u32 %s78, 1
        %s249 = scalar_lea.sflag [#allocation7], %s248
        %s250 = sand.u32 %s78, 1
        %s251 = smul.addr %s250, 256
        %s252 = scalar_lea.vmem [#allocation6], %s251
        %p253 = pneg %p91
        %p254 = pneg %p88
        %p255 = scmp.lt.s32.totalorder %s27, 0
        %s256 = scalar_select %p255, %s27, 0
        %s257 = scalar_lea.vmem %s2, %s256
        %p258 = pneg %p117
        %p259 = pneg %p114
        %p260 = pneg %p145
        %p261 = pneg %p142
        %s262 = smul.u32 2, %s26
        %s263 = smul.u32 4, %s28
        %s264 = smul.u32 64, %s28
        %p265 = scmp.lt.s32.totalorder %s27, 0
        %s266 = scalar_select %p265, %s27, 0
        %s267 = scalar_lea.vmem %s2, %s266
        %s268 = smul.u32 2, %s26
        %p270 = scmp.eq.s32.totalorder %s28, 0
        // Predicated region
        $region41: #{tpu_custom_call.1} parent=31 // pred_check
          %p271 = pneg %p270
        $region42: #{tpu_custom_call.1} parent=31 // pred_check_branch
          %273 = sbr.rel (%p271) target = $region44
        $region43: #{tpu_custom_call.1} parent=31 // pred_region
          %274 = vst [vmem:[#allocation2] sm:$0xff] 0.0
          %275 = vst [vmem:[#allocation2 + $0x8] sm:$0xff] 0.0
        $region44: #{tpu_custom_call.1} parent=31 // pred_fallthru
          _
        %v276 = vld [vmem:[#allocation2] sm:$0xff]
        %v277 = vld [vmem:[#allocation2 + $0x8] sm:$0xff]
        %v278 = vld [vmem:[%s227] sm:$0xff]
        %v279 = vld [vmem:[%s227 + $0x8] sm:$0xff]
        %v280 = vld [vmem:[%s227 + $0x10] sm:$0xff]
        %v281 = vld [vmem:[%s227 + $0x18] sm:$0xff]
        %v282 = vld [vmem:[%s236] sm:$0xf]
        %v283 = vld [vmem:[%s236 + $0x4] sm:$0xf]
        %v284 = vld [vmem:[%s236 + $0x8] sm:$0xf]
        %v285 = vld [vmem:[%s236 + $0xc] sm:$0xf]
        %v286 = vld [vmem:[%s236 + $0x10] sm:$0xf]
        %v287 = vld [vmem:[%s236 + $0x14] sm:$0xf]
        %v288 = vld [vmem:[%s236 + $0x18] sm:$0xf]
        %v289 = vld [vmem:[%s236 + $0x1c] sm:$0xf]
        %v290 = vld [vmem:[%s236 + $0x20] sm:$0xf]
        %v291 = vld [vmem:[%s236 + $0x24] sm:$0xf]
        %v292 = vld [vmem:[%s236 + $0x28] sm:$0xf]
        %v293 = vld [vmem:[%s236 + $0x2c] sm:$0xf]
        %v294 = vld [vmem:[%s236 + $0x30] sm:$0xf]
        %v295 = vld [vmem:[%s236 + $0x34] sm:$0xf]
        %v296 = vld [vmem:[%s236 + $0x38] sm:$0xf]
        %v297 = vld [vmem:[%s236 + $0x3c] sm:$0xf]
        %v298 = vld [vmem:[%s236 + $0x40] sm:$0xf]
        %v299 = vld [vmem:[%s236 + $0x44] sm:$0xf]
        %v300 = vld [vmem:[%s236 + $0x48] sm:$0xf]
        %v301 = vld [vmem:[%s236 + $0x4c] sm:$0xf]
        %v302 = vld [vmem:[%s236 + $0x50] sm:$0xf]
        %v303 = vld [vmem:[%s236 + $0x54] sm:$0xf]
        %v304 = vld [vmem:[%s236 + $0x58] sm:$0xf]
        %v305 = vld [vmem:[%s236 + $0x5c] sm:$0xf]
        %v306 = vld [vmem:[%s236 + $0x60] sm:$0xf]
        %v307 = vld [vmem:[%s236 + $0x64] sm:$0xf]
        %v308 = vld [vmem:[%s236 + $0x68] sm:$0xf]
        %v309 = vld [vmem:[%s236 + $0x6c] sm:$0xf]
        %v310 = vld [vmem:[%s236 + $0x70] sm:$0xf]
        %v311 = vld [vmem:[%s236 + $0x74] sm:$0xf]
        %v312 = vld [vmem:[%s236 + $0x78] sm:$0xf]
        %v313 = vld [vmem:[%s236 + $0x7c] sm:$0xf]
        %v314 = vld [vmem:[%s236 + $0x80] sm:$0xf]
        %v315 = vld [vmem:[%s236 + $0x84] sm:$0xf]
        %v316 = vld [vmem:[%s236 + $0x88] sm:$0xf]
        %v317 = vld [vmem:[%s236 + $0x8c] sm:$0xf]
        %v318 = vld [vmem:[%s236 + $0x90] sm:$0xf]
        %v319 = vld [vmem:[%s236 + $0x94] sm:$0xf]
        %v320 = vld [vmem:[%s236 + $0x98] sm:$0xf]
        %v321 = vld [vmem:[%s236 + $0x9c] sm:$0xf]
        %v322 = vld [vmem:[%s236 + $0xa0] sm:$0xf]
        %v323 = vld [vmem:[%s236 + $0xa4] sm:$0xf]
        %v324 = vld [vmem:[%s236 + $0xa8] sm:$0xf]
        %v325 = vld [vmem:[%s236 + $0xac] sm:$0xf]
        %v326 = vld [vmem:[%s236 + $0xb0] sm:$0xf]
        %v327 = vld [vmem:[%s236 + $0xb4] sm:$0xf]
        %v328 = vld [vmem:[%s236 + $0xb8] sm:$0xf]
        %v329 = vld [vmem:[%s236 + $0xbc] sm:$0xf]
        %v330 = vld [vmem:[%s236 + $0xc0] sm:$0xf]
        %v331 = vld [vmem:[%s236 + $0xc4] sm:$0xf]
        %v332 = vld [vmem:[%s236 + $0xc8] sm:$0xf]
        %v333 = vld [vmem:[%s236 + $0xcc] sm:$0xf]
        %v334 = vld [vmem:[%s236 + $0xd0] sm:$0xf]
        %v335 = vld [vmem:[%s236 + $0xd4] sm:$0xf]
        %v336 = vld [vmem:[%s236 + $0xd8] sm:$0xf]
        %v337 = vld [vmem:[%s236 + $0xdc] sm:$0xf]
        %v338 = vld [vmem:[%s236 + $0xe0] sm:$0xf]
        %v339 = vld [vmem:[%s236 + $0xe4] sm:$0xf]
        %v340 = vld [vmem:[%s236 + $0xe8] sm:$0xf]
        %v341 = vld [vmem:[%s236 + $0xec] sm:$0xf]
        %v342 = vld [vmem:[%s236 + $0xf0] sm:$0xf]
        %v343 = vld [vmem:[%s236 + $0xf4] sm:$0xf]
        %v344 = vld [vmem:[%s236 + $0xf8] sm:$0xf]
        %v345 = vld [vmem:[%s236 + $0xfc] sm:$0xf]
        %v350 = vunpack.c.l.b16 %v278
        %v351 = vunpack.c.h.b16 %v278
        %v352 = vunpack.c.l.b16 %v279
        %v353 = vunpack.c.h.b16 %v279
        %v354 = vunpack.c.l.b16 %v280
        %v355 = vunpack.c.h.b16 %v280
        %v356 = vunpack.c.l.b16 %v281
        %v357 = vunpack.c.h.b16 %v281
        %v358 = vpack.c.b16 %v354, %v350
        %v359 = vpack.c.b16 %v355, %v351
        %v360 = vpack.c.b16 %v356, %v352
        %v361 = vpack.c.b16 %v357, %v353
        %v430 = vunpack.c.l.b16 %v282
        %v431 = vunpack.c.l.b16 %v283
        %v432 = vunpack.c.l.b16 %v284
        %v433 = vunpack.c.l.b16 %v285
        %v434 = vunpack.c.l.b16 %v286
        %v435 = vunpack.c.l.b16 %v287
        %v436 = vunpack.c.l.b16 %v288
        %v437 = vunpack.c.l.b16 %v289
        %v438 = vunpack.c.l.b16 %v290
        %v439 = vunpack.c.l.b16 %v291
        %v440 = vunpack.c.l.b16 %v292
        %v441 = vunpack.c.l.b16 %v293
        %v442 = vunpack.c.l.b16 %v294
        %v443 = vunpack.c.l.b16 %v295
        %v444 = vunpack.c.l.b16 %v296
        %v445 = vunpack.c.l.b16 %v297
        %v446 = vunpack.c.l.b16 %v298
        %v447 = vunpack.c.l.b16 %v299
        %v448 = vunpack.c.l.b16 %v300
        %v449 = vunpack.c.l.b16 %v301
        %v450 = vunpack.c.l.b16 %v302
        %v451 = vunpack.c.l.b16 %v303
        %v452 = vunpack.c.l.b16 %v304
        %v453 = vunpack.c.l.b16 %v305
        %v454 = vunpack.c.l.b16 %v306
        %v455 = vunpack.c.l.b16 %v307
        %v456 = vunpack.c.l.b16 %v308
        %v457 = vunpack.c.l.b16 %v309
        %v458 = vunpack.c.l.b16 %v310
        %v459 = vunpack.c.l.b16 %v311
        %v460 = vunpack.c.l.b16 %v312
        %v461 = vunpack.c.l.b16 %v313
        %v462 = vunpack.c.l.b16 %v314
        %v463 = vunpack.c.l.b16 %v315
        %v464 = vunpack.c.l.b16 %v316
        %v465 = vunpack.c.l.b16 %v317
        %v466 = vunpack.c.l.b16 %v318
        %v467 = vunpack.c.l.b16 %v319
        %v468 = vunpack.c.l.b16 %v320
        %v469 = vunpack.c.l.b16 %v321
        %v470 = vunpack.c.l.b16 %v322
        %v471 = vunpack.c.l.b16 %v323
        %v472 = vunpack.c.l.b16 %v324
        %v473 = vunpack.c.l.b16 %v325
        %v474 = vunpack.c.l.b16 %v326
        %v475 = vunpack.c.l.b16 %v327
        %v476 = vunpack.c.l.b16 %v328
        %v477 = vunpack.c.l.b16 %v329
        %v478 = vunpack.c.l.b16 %v330
        %v479 = vunpack.c.l.b16 %v331
        %v480 = vunpack.c.l.b16 %v332
        %v481 = vunpack.c.l.b16 %v333
        %v482 = vunpack.c.l.b16 %v334
        %v483 = vunpack.c.l.b16 %v335
        %v484 = vunpack.c.l.b16 %v336
        %v485 = vunpack.c.l.b16 %v337
        %v486 = vunpack.c.l.b16 %v338
        %v487 = vunpack.c.l.b16 %v339
        %v488 = vunpack.c.l.b16 %v340
        %v489 = vunpack.c.l.b16 %v341
        %v490 = vunpack.c.l.b16 %v342
        %v491 = vunpack.c.l.b16 %v343
        %v492 = vunpack.c.l.b16 %v344
        %v493 = vunpack.c.l.b16 %v345
        %v494 = vpack.c.b16 %v431, %v430
        %v495 = vpack.c.b16 %v433, %v432
        %v496 = vpack.c.b16 %v435, %v434
        %v497 = vpack.c.b16 %v437, %v436
        %v498 = vpack.c.b16 %v439, %v438
        %v499 = vpack.c.b16 %v441, %v440
        %v500 = vpack.c.b16 %v443, %v442
        %v501 = vpack.c.b16 %v445, %v444
        %v502 = vpack.c.b16 %v447, %v446
        %v503 = vpack.c.b16 %v449, %v448
        %v504 = vpack.c.b16 %v451, %v450
        %v505 = vpack.c.b16 %v453, %v452
        %v506 = vpack.c.b16 %v455, %v454
        %v507 = vpack.c.b16 %v457, %v456
        %v508 = vpack.c.b16 %v459, %v458
        %v509 = vpack.c.b16 %v461, %v460
        %v510 = vpack.c.b16 %v463, %v462
        %v511 = vpack.c.b16 %v465, %v464
        %v512 = vpack.c.b16 %v467, %v466
        %v513 = vpack.c.b16 %v469, %v468
        %v514 = vpack.c.b16 %v471, %v470
        %v515 = vpack.c.b16 %v473, %v472
        %v516 = vpack.c.b16 %v475, %v474
        %v517 = vpack.c.b16 %v477, %v476
        %v518 = vpack.c.b16 %v479, %v478
        %v519 = vpack.c.b16 %v481, %v480
        %v520 = vpack.c.b16 %v483, %v482
        %v521 = vpack.c.b16 %v485, %v484
        %v522 = vpack.c.b16 %v487, %v486
        %v523 = vpack.c.b16 %v489, %v488
        %v524 = vpack.c.b16 %v491, %v490
        %v525 = vpack.c.b16 %v493, %v492
        %558 = vmatprep.subr.bf16.mxu0 0
        %559 = vmatpush1.bf16.msra.mxu0 %v501
        %560 = vmatprep.subr.bf16.mxu0 0
        %561 = vmatpush1.bf16.msra.mxu0 %v500
        %562 = vmatprep.subr.bf16.mxu0 0
        %563 = vmatpush1.bf16.msra.mxu0 %v499
        %564 = vmatprep.subr.bf16.mxu0 0
        %565 = vmatpush1.bf16.msra.mxu0 %v498
        %566 = vmatprep.subr.bf16.mxu0 0
        %567 = vmatpush1.bf16.msra.mxu0 %v497
        %568 = vmatprep.subr.bf16.mxu0 0
        %569 = vmatpush1.bf16.msra.mxu0 %v496
        %570 = vmatprep.subr.bf16.mxu0 0
        %571 = vmatpush1.bf16.msra.mxu0 %v495
        %572 = vmatprep.subr.bf16.mxu0 0
        %573 = vmatpush1.bf16.msra.mxu0 %v494
        %574 = vmatprep.subr.bf16.mxu0 0
        %575 = vmatpush2.bf16.msra.mxu0 %v509
        %576 = vmatprep.subr.bf16.mxu0 0
        %577 = vmatpush2.bf16.msra.mxu0 %v508
        %578 = vmatprep.subr.bf16.mxu0 0
        %579 = vmatpush2.bf16.msra.mxu0 %v507
        %580 = vmatprep.subr.bf16.mxu0 0
        %581 = vmatpush2.bf16.msra.mxu0 %v506
        %582 = vmatprep.subr.bf16.mxu0 0
        %583 = vmatpush2.bf16.msra.mxu0 %v505
        %584 = vmatprep.subr.bf16.mxu0 0
        %585 = vmatpush2.bf16.msra.mxu0 %v504
        %586 = vmatprep.subr.bf16.mxu0 0
        %587 = vmatpush2.bf16.msra.mxu0 %v503
        %588 = vmatprep.subr.bf16.mxu0 0
        %589 = vmatpush2.bf16.msra.mxu0 %v502
        %590 = vmatprep.mubr.bf16.mxu0 %v359
        %591 = vmatmul.mubr.bf16.gmra.mxu0 %v358
        %v592 = vpop.f32.mrf.mxu0
        %v593 = vadd.f32 0.0, %v592
        %v594 = vpop.f32.mrf.mxu0
        %v595 = vpop.f32.mrf.mxu0
        %v596 = vadd.f32 0.0, %v595
        %v597 = vpop.f32.mrf.mxu0
        %598 = vdwg.mxu0
        %599 = vmatprep.subr.bf16.mxu0 0
        %600 = vmatpush1.bf16.msra.mxu0 %v517
        %601 = vmatprep.subr.bf16.mxu0 0
        %602 = vmatpush1.bf16.msra.mxu0 %v516
        %603 = vmatprep.subr.bf16.mxu0 0
        %604 = vmatpush1.bf16.msra.mxu0 %v515
        %605 = vmatprep.subr.bf16.mxu0 0
        %606 = vmatpush1.bf16.msra.mxu0 %v514
        %607 = vmatprep.subr.bf16.mxu0 0
        %608 = vmatpush1.bf16.msra.mxu0 %v513
        %609 = vmatprep.subr.bf16.mxu0 0
        %610 = vmatpush1.bf16.msra.mxu0 %v512
        %611 = vmatprep.subr.bf16.mxu0 0
        %612 = vmatpush1.bf16.msra.mxu0 %v511
        %613 = vmatprep.subr.bf16.mxu0 0
        %614 = vmatpush1.bf16.msra.mxu0 %v510
        %615 = vmatprep.subr.bf16.mxu0 0
        %616 = vmatpush2.bf16.msra.mxu0 %v525
        %617 = vmatprep.subr.bf16.mxu0 0
        %618 = vmatpush2.bf16.msra.mxu0 %v524
        %619 = vmatprep.subr.bf16.mxu0 0
        %620 = vmatpush2.bf16.msra.mxu0 %v523
        %621 = vmatprep.subr.bf16.mxu0 0
        %622 = vmatpush2.bf16.msra.mxu0 %v522
        %623 = vmatprep.subr.bf16.mxu0 0
        %624 = vmatpush2.bf16.msra.mxu0 %v521
        %625 = vmatprep.subr.bf16.mxu0 0
        %626 = vmatpush2.bf16.msra.mxu0 %v520
        %627 = vmatprep.subr.bf16.mxu0 0
        %628 = vmatpush2.bf16.msra.mxu0 %v519
        %629 = vmatprep.subr.bf16.mxu0 0
        %630 = vmatpush2.bf16.msra.mxu0 %v518
        %631 = vmatprep.mubr.bf16.mxu0 %v361
        %632 = vmatmul.mubr.bf16.gmra.mxu0 %v360
        %v633 = vpop.f32.mrf.mxu0
        %v634 = vadd.f32 %v593, %v633
        %v635 = vpop.f32.mrf.mxu0
        %v636 = vpop.f32.mrf.mxu0
        %v637 = vadd.f32 %v596, %v636
        %v638 = vpop.f32.mrf.mxu0
        %639 = vdwg.mxu0
        %v640 = vadd.f32 %v276, %v634
        %v641 = vadd.f32 %v277, %v637
        %642 = vst [vmem:[#allocation2] sm:$0xff] %v640
        %643 = vst [vmem:[#allocation2 + $0x8] sm:$0xff] %v641
        %p644 = scmp.eq.s32.totalorder %s28, 1
        // Predicated region
        $region45: #{tpu_custom_call.1} parent=31 // pred_check
          %p645 = pneg %p644
        $region46: #{tpu_custom_call.1} parent=31 // pred_check_branch
          %647 = sbr.rel (%p645) target = $region48
        $region47: #{tpu_custom_call.1} parent=31 // pred_region
          %v648 = vld [vmem:[#allocation2] sm:$0xff]
          %v649 = vld [vmem:[#allocation2 + $0x8] sm:$0xff]
          %v650 = vld [vmem:[%s267] sm:$0x1]
          %v652 = vlaneseq
          %v653 = vshrl.u32 %v652, 7
          %v654 = vsub.s32 0, %v653
          %v655 = vrot.slane %v650, %v654
          %v657 = vadd.f32 %v648, %v655
          %v658 = vadd.f32 %v649, %v655
          %v659 = vmax.f32 %v657, 0.0
          %v660 = vmax.f32 %v658, 0.0
          %661 = vst [vmem:[#allocation8] sm:$0xff] %v659
          %662 = vst [vmem:[#allocation8 + $0x8] sm:$0xff] %v660
        $region48: #{tpu_custom_call.1} parent=31 // pred_fallthru
          _
        // Predicated region
        $region49: #{tpu_custom_call.1} parent=31 // pred_check
          %p663 = pneg %p142
        $region50: #{tpu_custom_call.1} parent=31 // pred_check_branch
          %665 = sbr.rel (%p663) target = $region52
        $region51: #{tpu_custom_call.1} parent=31 // pred_region
          %s666 = smul.u32 2, %s26
          %s668 = ssub.s32 256, 256
          %669 = vsyncadd [#allocation5], %s668
          %s670 = sadd.s32 %s27, %s666
          %s671 = smul.addr %s670, 128
          %s672 = scalar_lea.hbm %s3, %s671
          %s673 = sshll.u32 [#allocation8], 4
          %s674 = int_to_ptr.vmem [resolvable:$true] %s673
          %679 = dma.vmem_to_hbm [thread:$0]  %s674, 256, %s672, [#allocation5], 128, 128, 8
        $region52: #{tpu_custom_call.1} parent=31 // pred_fallthru
          _
        // Predicated region
        $region53: #{tpu_custom_call.1} parent=31 // pred_check
          %p680 = pneg %p142
        $region54: #{tpu_custom_call.1} parent=31 // pred_check_branch
          %682 = sbr.rel (%p680) target = $region56
        $region55: #{tpu_custom_call.1} parent=31 // pred_region
          %683 = dma.done [#allocation5], 256
        $region56: #{tpu_custom_call.1} parent=31 // pred_fallthru
          _
      $region32: #{tpu_custom_call.1} parent=5 // pred_fallthru
        _
      %p684 = scmp.le.s32.totalorder 2, %s16
      // Predicated region
      $region57: #{tpu_custom_call.1} parent=5 // pred_check
        %p685 = pneg %p684
      $region58: #{tpu_custom_call.1} parent=5 // pred_check_branch
        %687 = sbr.rel (%p685) target = $region60
      $region59: #{tpu_custom_call.1} parent=5 // pred_region
        %s688 = ssub.s32 %s16, 2
      $region60: #{tpu_custom_call.1} parent=5 // pred_fallthru
        _
    $region6: #{tpu_custom_call.1} parent=1 // loop_footer
      %s20 = sadd.s32 1, %s16
    $region7: #{tpu_custom_call.1} parent=1 // loop_footer_branch
      %15 = sbr.rel target = $region3
    $region8: #{tpu_custom_call.1} parent=1 // loop_exit
      _
    %689 = vsyncpa [#allocation4], 1
    %s690 = scalar_lea.sflag [#allocation4], 1
    %691 = vsyncpa %s690, 1
    %692 = vsyncpa [#allocation7], 1
    %s693 = scalar_lea.sflag [#allocation7], 1
    %694 = vsyncpa %s693, 1
    %695 = vsyncpa [#allocation5], 1
    %s696 = scalar_lea.sflag [#allocation5], 1
    %697 = vsyncpa %s696, 1

</llo_original>
